<compile_context>
chip_gen: v6e
topology: v6e:2x2x1
jax: 0.10.0
libtpu: 0.0.40
codegen_flags: <defaults>
</compile_context>

<pallas_src>
import functools
import math

import jax
import jax.numpy as jnp
import numpy as np
from jax import lax
from jax.experimental import pallas as pl
from jax.experimental.pallas import tpu as pltpu


# --------------------------------------------------------------------------- #
# Static (numpy, trace-time) helpers: B-spline kernel & interpolation matrices
# --------------------------------------------------------------------------- #
def _bspline_kernel_2d(spacing, order):
    """Mirrors bspline_kernel_2d: iterative box-filtering of an all-ones kernel."""
    s0, s1 = int(spacing[0]), int(spacing[1])
    kernel = np.ones((s0, s1), np.float64)
    for i in range(1, order + 1):
        p0, p1 = i * s0, i * s1
        padded = np.pad(kernel, ((p0, p0), (p1, p1)))
        out_h = padded.shape[0] - s0 + 1
        out_w = padded.shape[1] - s1 + 1
        out = np.zeros((out_h, out_w), np.float64)
        for di in range(s0):              # correlation with an all-ones window
            for dj in range(s1):
                out += padded[di:di + out_h, dj:dj + out_w]
        kernel = out / (s0 * s1)
    return kernel.astype(np.float32)


def _align_corners_interp_matrix(out_size, in_size):
    """Dense (out_size, in_size) linear interpolation matrix, align_corners=True."""
    mat = np.zeros((out_size, in_size), np.float32)
    if in_size == 1 or out_size == 1:
        mat[:, 0] = 1.0
        return mat
    scale = (in_size - 1) / (out_size - 1)
    for i in range(out_size):
        x = i * scale
        x0 = min(int(np.floor(x)), in_size - 2)
        frac = x - x0
        mat[i, x0] = 1.0 - frac
        mat[i, x0 + 1] = frac
    return mat


def _unit_normalize_l2(d):
    """Mirrors AdvTransformBase.unit_normalize(p_type='l2')."""
    b = d.shape[0]
    flat = d.reshape(b, -1)
    amax = jnp.max(jnp.abs(flat), axis=1, keepdims=True)
    flat = flat / (1e-20 + amax)
    flat = flat / jnp.sqrt(1e-6 + jnp.sum(flat * flat, axis=1, keepdims=True))
    return flat.reshape(d.shape)


# --------------------------------------------------------------------------- #
# Pallas kernel: fused  exp -> per-sample rescale -> broadcast multiply
# --------------------------------------------------------------------------- #
def _apply_bias_kernel(old_min_ref, scale_ref, bias_ref, data_ref, out_ref, *, new_min):
    # old_min_ref / scale_ref : (N,) f32 in SMEM  (per-sample rescale params)
    # bias_ref                : (1, 1, h_tile, W) pre-exp bias-field tile
    # data_ref / out_ref      : (1, C, h_tile, W)
    n = pl.program_id(0)
    old_min = old_min_ref[n]                 # one SMEM read each, per tile
    scale = scale_ref[n]
    # rescale_intensity(exp(x)) — same op order as the PyTorch reference
    bias = (jnp.exp(bias_ref[...]) - old_min + 1e-20) * scale + new_min
    out_ref[...] = (data_ref[...] * bias).astype(out_ref.dtype)   # broadcast over C


_SUBLANE_FOR_ITEMSIZE = {8: 8, 4: 8, 2: 16, 1: 32}


def _tile_policy():
    """Generation-aware data-block size (bytes) and scoped-VMEM limit."""
    try:
        kind = jax.devices()[0].device_kind.lower()
    except Exception:
        kind = ""
    if "v5" in kind:
        return 2 * 1024 * 1024, None                 # stay under v5e's 16 MiB default
    if "v7" in kind:
        return 6 * 1024 * 1024, 48 * 1024 * 1024     # 64 MiB physical VMEM: headroom
    if "v6" in kind:
        return 4 * 1024 * 1024, 48 * 1024 * 1024
    return 2 * 1024 * 1024, None                     # safe default elsewhere


def _choose_h_tile(n, c, h, w, itemsize, target_bytes, min_grid_steps=8):
    """Largest h_tile that (a) keeps the data block near target_bytes, (b) leaves
    >= min_grid_steps grid steps (pipeline steady state / megacore split),
    (c) is a multiple of the dtype's sublane count, and (d) divides H exactly."""
    sublane = _SUBLANE_FOR_ITEMSIZE.get(itemsize, 8)
    row_bytes = max(1, c * w * itemsize)
    h_fit = max(1, target_bytes // row_bytes)
    blocks_per_sample = max(1, -(-min_grid_steps // max(1, n)))    # ceil div
    h_cap = max(1, h // blocks_per_sample)
    cap = min(h, h_fit, h_cap)
    cap = max(cap, min(sublane, h))
    t = (cap // sublane) * sublane
    while t >= sublane:
        if h % t == 0:
            return t
        t -= sublane
    return h          # full-dim block is always legal (e.g. H < sublane)


def _apply_bias_field(data, diff_bias, old_min, scale, new_min):
    """out[n,c,h,w] = data[n,c,h,w] * ((exp(diff_bias[n,0,h,w]) - old_min[n] + eps)
                                        * scale[n] + new_min)"""
    n, c, h, w = data.shape
    target_bytes, vmem_limit = _tile_policy()
    h_tile = _choose_h_tile(n, c, h, w, data.dtype.itemsize, target_bytes)
    grid = (n, h // h_tile)

    cp_kwargs = dict(dimension_semantics=("parallel", "parallel"))
    if vmem_limit is not None:
        cp_kwargs["vmem_limit_bytes"] = int(vmem_limit)

    return pl.pallas_call(
        functools.partial(_apply_bias_kernel, new_min=float(new_min)),
        out_shape=jax.ShapeDtypeStruct((n, c, h, w), data.dtype),
        grid=grid,
        in_specs=[
            pl.BlockSpec(memory_space=pltpu.SMEM),                        # old_min (N,)
            pl.BlockSpec(memory_space=pltpu.SMEM),                        # scale   (N,)
            pl.BlockSpec((1, 1, h_tile, w), lambda i, j: (i, 0, j, 0)),   # bias tile
            pl.BlockSpec((1, c, h_tile, w), lambda i, j: (i, 0, j, 0)),   # data tile
        ],
        out_specs=pl.BlockSpec((1, c, h_tile, w), lambda i, j: (i, 0, j, 0)),
        compiler_params=pltpu.CompilerParams(**cp_kwargs),
    )(old_min, scale, diff_bias, data)


# --------------------------------------------------------------------------- #
# AdvBias port
# --------------------------------------------------------------------------- #
class AdvBiasPallas:
    """JAX/Pallas port of AdvBias: forward(data) = rescaled exp(B-spline field) * data."""

    def __init__(self, config_dict, debug=False):
        self.debug = debug
        self.epsilon = float(config_dict['epsilon'])
        self.xi = float(config_dict['xi'])
        self.spacing = [int(s) for s in config_dict['control_point_spacing']]
        self.downscale = float(config_dict['downscale'])
        self.order = int(config_dict['interpolation_order'])
        data_size = config_dict['data_size']
        self.batch_size = int(data_size[0])
        self.image_size = np.array([int(data_size[-2]), int(data_size[-1])])

        # ---- static geometry (mirrors AdvBias.init_bias_field) ----
        stride = np.array(self.spacing, dtype=np.int64)
        cp_grid = np.ceil((self.image_size / self.downscale) / stride).astype(np.int64)
        inner = stride * cp_grid - (stride - 1)
        cp_grid = cp_grid + 2
        diff = inner - self.image_size / self.downscale
        diff_floor = np.floor(np.abs(diff) / 2) * np.sign(diff)
        crop_start = (diff_floor + np.remainder(diff, 2) * np.sign(diff)).astype(np.int64)
        crop_end = diff_floor.astype(np.int64)

        kernel2d = _bspline_kernel_2d(self.spacing, self.order)
        padding = [(k - 1) // 2 for k in kernel2d.shape]

        self.cp_shape = (self.batch_size, 1, int(cp_grid[0]), int(cp_grid[1]))
        self._stride = [int(stride[0]), int(stride[1])]
        self._padding = padding
        self._crop_start = [int(crop_start[0]), int(crop_start[1])]
        self._crop_end = [int(crop_end[0]), int(crop_end[1])]
        self._kernel = jnp.asarray(kernel2d)[None, None]        # (1, 1, K0, K1)

        # static output sizes: conv_transpose -> crop -> upsample
        K0, K1 = kernel2d.shape
        s0, s1 = self._stride
        conv_h = (self.cp_shape[2] - 1) * s0 - 2 * padding[0] + K0
        conv_w = (self.cp_shape[3] - 1) * s1 - 2 * padding[1] + K1
        crop_h = conv_h - 2 * s0 - self._crop_start[0] - self._crop_end[0]
        crop_w = conv_w - 2 * s1 - self._crop_start[1] - self._crop_end[1]
        scale_factor = float(self.image_size[0]) / float(crop_h)
        up_h = int(math.floor(crop_h * scale_factor + 1e-6))
        up_w = int(math.floor(crop_w * scale_factor + 1e-6))
        assert up_h == self.image_size[0] and up_w == self.image_size[1], (
            "upsampled bias field does not match data_size; choose "
            "control_point_spacing / downscale consistent with the image size")
        # align_corners=True bilinear upsample expressed as two small dense matmuls
        self._Wh = jnp.asarray(_align_corners_interp_matrix(up_h, crop_h))
        self._Ww = jnp.asarray(_align_corners_interp_matrix(up_w, crop_w))

        self.param = None
        self._forward_jit = jax.jit(self._forward_impl)

    # -- parameter init: gaussian control points, l2 unit-normalized per sample --
    def init_parameters(self, key):
        cp = jax.random.normal(key, self.cp_shape, dtype=jnp.float32)
        self.param = _unit_normalize_l2(cp)
        return self.param

    # -- small XLA ops on the (N, 1, H, W) field --
    def _compute_diff_bias(self, cpoints):
        """conv_transpose2d(cp, bspline) -> crop -> align_corners upsample (pre-exp)."""
        K0, K1 = self._kernel.shape[-2], self._kernel.shape[-1]
        s0, s1 = self._stride
        p0, p1 = self._padding
        # conv_transpose2d(x, w, stride=s, padding=p)
        #   == conv(lhs_dilate(x, s), flip(w), padding = K - 1 - p)
        x = lax.conv_general_dilated(
            cpoints, jnp.flip(self._kernel, axis=(-2, -1)),
            window_strides=(1, 1),
            padding=[(K0 - 1 - p0, K0 - 1 - p0), (K1 - 1 - p1, K1 - 1 - p1)],
            lhs_dilation=(s0, s1),
            dimension_numbers=('NCHW', 'OIHW', 'NCHW'))
        cs, ce = self._crop_start, self._crop_end
        x = x[:, :, s0 + cs[0]: -s0 - ce[0], s1 + cs[1]: -s1 - ce[1]]
        return jnp.einsum('it,nctw,jw->ncij', self._Wh, x, self._Ww)   # (N,1,H,W)

    def _forward_impl(self, data, cpoints):
        n = data.shape[0]
        diff_bias = self._compute_diff_bias(cpoints)
        flat = diff_bias.reshape(n, -1)
        # exp is monotone -> min/max of exp(field) == exp(min/max of field)
        old_min = jnp.exp(jnp.min(flat, axis=1)).astype(jnp.float32)
        old_max = jnp.exp(jnp.max(flat, axis=1)).astype(jnp.float32)
        new_min, new_max = 1.0 - self.epsilon, 1.0 + self.epsilon
        scale = ((new_max - new_min) / (old_max - old_min + 1e-20)).astype(jnp.float32)
        return _apply_bias_field(data, diff_bias, old_min, scale, new_min)

    def forward(self, data):
        assert self.param is not None, 'init param before transform data'
        return self._forward_jit(data, self.param)

    __call__ = forward


# --------------------------------------------------------------------------- #
# Pure-JAX reference for the fused Pallas part (exp -> rescale -> multiply)
# --------------------------------------------------------------------------- #
def _reference_forward(adv, data):
    n, _, h, w = data.shape[0], data.shape[1], data.shape[2], data.shape[3]
    bias = jnp.exp(adv._compute_diff_bias(adv.param))
    flat = bias.reshape(n, -1)
    mn = jnp.min(flat, axis=1, keepdims=True)
    mx = jnp.max(flat, axis=1, keepdims=True)
    flat = ((flat - mn + 1e-20) / (mx - mn + 1e-20)
            * (2.0 * adv.epsilon) + (1.0 - adv.epsilon))
    return data * flat.reshape(n, 1, h, w)


# --------------------------------------------------------------------------- #
if __name__ == "__main__":
    root = jax.random.PRNGKey(0)
    k_cp1, k_data1, k_cp2, k_data2 = jax.random.split(root, 4)

    # ---- small N4HW example (module docstring: data is N4HW) ----
    N, C, H, W = 2, 4, 16, 16
    cfg = dict(epsilon=0.3, xi=1e-6, control_point_spacing=[4, 4], downscale=2,
               data_size=[N, 1, H, W], interpolation_order=3,
               init_mode='gaussian', space='log')
    adv = AdvBiasPallas(cfg)
    adv.init_parameters(k_cp1)
    data = jax.random.normal(k_data1, (N, C, H, W), dtype=jnp.float32)

    out = jax.block_until_ready(adv.forward(data))
    ref = _reference_forward(adv, data)
    np.testing.assert_allclose(np.asarray(out), np.asarray(ref), rtol=1e-5, atol=1e-5)

    # ---- larger shape: exercises the multi-tile pipelined / megacore path ----
    N2, C2, H2, W2 = 2, 4, 128, 128
    cfg2 = dict(cfg, control_point_spacing=[8, 8], data_size=[N2, 1, H2, W2])
    adv2 = AdvBiasPallas(cfg2)
    adv2.init_parameters(k_cp2)
    data2 = jax.random.normal(k_data2, (N2, C2, H2, W2), dtype=jnp.float32)

    out2 = jax.block_until_ready(adv2.forward(data2))
    ref2 = _reference_forward(adv2, data2)
    np.testing.assert_allclose(np.asarray(out2), np.asarray(ref2), rtol=1e-5, atol=1e-5)

    print("KERNEL_OK")
</pallas_src>

<mosaic_0001>
module attributes {stable_mosaic.version = 11 : i64} {
  func.func @_apply_bias_kernel(%arg0: i32, %arg1: i32, %arg2: memref<2xf32, #tpu.memory_space<smem>>, %arg3: memref<2xf32, #tpu.memory_space<smem>>, %arg4: memref<1x1x8x16xf32, #tpu.memory_space<vmem>>, %arg5: memref<1x4x8x16xf32, #tpu.memory_space<vmem>>, %arg6: memref<1x4x8x16xf32, #tpu.memory_space<vmem>>) attributes {dimension_semantics = [#tpu.dimension_semantics<parallel>, #tpu.dimension_semantics<parallel>], iteration_bounds = array<i64: 2, 2>, scalar_prefetch = 0 : i64, scratch_operands = 0 : i64, tpu.core_type = #tpu.core_type<tc>, window_params = [{transform_indices = @transform_0, window_bounds = array<i64: 2>}, {transform_indices = @transform_1, window_bounds = array<i64: 2>}, {transform_indices = @transform_2, window_bounds = array<i64: 1, 1, 8, 16>}, {transform_indices = @transform_3, window_bounds = array<i64: 1, 4, 8, 16>}, {transform_indices = @transform_4, window_bounds = array<i64: 1, 4, 8, 16>}]} {
    %0 = arith.index_cast %arg0 : i32 to index
    %1 = memref.load %arg2[%0] : memref<2xf32, #tpu.memory_space<smem>>
    %2 = arith.index_cast %arg0 : i32 to index
    %3 = memref.load %arg3[%2] : memref<2xf32, #tpu.memory_space<smem>>
    %c0 = arith.constant 0 : index
    %c0_0 = arith.constant 0 : index
    %c0_1 = arith.constant 0 : index
    %c0_2 = arith.constant 0 : index
    %4 = vector.load %arg4[%c0, %c0_0, %c0_1, %c0_2] : memref<1x1x8x16xf32, #tpu.memory_space<vmem>>, vector<1x1x8x16xf32>
    %5 = math.exp %4 : vector<1x1x8x16xf32>
    %6 = vector.broadcast %1 : f32 to vector<1x1x8x16xf32>
    %7 = arith.subf %5, %6 : vector<1x1x8x16xf32>
    %cst = arith.constant 9.99999968E-21 : f32
    %8 = vector.broadcast %cst : f32 to vector<1x1x8x16xf32>
    %9 = arith.addf %7, %8 : vector<1x1x8x16xf32>
    %10 = vector.broadcast %3 : f32 to vector<1x1x8x16xf32>
    %11 = arith.mulf %9, %10 : vector<1x1x8x16xf32>
    %cst_3 = arith.constant 0.699999988 : f32
    %12 = vector.broadcast %cst_3 : f32 to vector<1x1x8x16xf32>
    %13 = arith.addf %11, %12 : vector<1x1x8x16xf32>
    %c0_4 = arith.constant 0 : index
    %c0_5 = arith.constant 0 : index
    %c0_6 = arith.constant 0 : index
    %c0_7 = arith.constant 0 : index
    %14 = vector.load %arg5[%c0_4, %c0_5, %c0_6, %c0_7] : memref<1x4x8x16xf32, #tpu.memory_space<vmem>>, vector<1x4x8x16xf32>
    %15 = vector.broadcast %13 : vector<1x1x8x16xf32> to vector<1x4x8x16xf32>
    %16 = arith.mulf %14, %15 : vector<1x4x8x16xf32>
    %c0_8 = arith.constant 0 : index
    %c0_9 = arith.constant 0 : index
    %c0_10 = arith.constant 0 : index
    %c0_11 = arith.constant 0 : index
    %17 = vector.load %arg6[%c0_8, %c0_9, %c0_10, %c0_11] : memref<1x4x8x16xf32, #tpu.memory_space<vmem>>, vector<1x4x8x16xf32>
    tpu.vector_store %arg6[%c0_8, %c0_9, %c0_10, %c0_11], %16 {strides = array<i32>} : memref<1x4x8x16xf32, #tpu.memory_space<vmem>>, vector<1x4x8x16xf32>,
    return
  }
  func.func @transform_0(%arg0: i32, %arg1: i32) -> i32 {
    %c0_i32 = arith.constant 0 : i32
    %c0_i32_0 = arith.constant 0 : i32
    return %c0_i32 : i32
  }
  func.func @transform_1(%arg0: i32, %arg1: i32) -> i32 {
    %c0_i32 = arith.constant 0 : i32
    %c0_i32_0 = arith.constant 0 : i32
    return %c0_i32 : i32
  }
  func.func @transform_2(%arg0: i32, %arg1: i32) -> (i32, i32, i32, i32) {
    %c0_i32 = arith.constant 0 : i32
    %c0_i32_0 = arith.constant 0 : i32
    %c0_i32_1 = arith.constant 0 : i32
    return %arg0, %c0_i32, %arg1, %c0_i32_0 : i32, i32, i32, i32
  }
  func.func @transform_3(%arg0: i32, %arg1: i32) -> (i32, i32, i32, i32) {
    %c0_i32 = arith.constant 0 : i32
    %c0_i32_0 = arith.constant 0 : i32
    %c0_i32_1 = arith.constant 0 : i32
    return %arg0, %c0_i32, %arg1, %c0_i32_0 : i32, i32, i32, i32
  }
  func.func @transform_4(%arg0: i32, %arg1: i32) -> (i32, i32, i32, i32) {
    %c0_i32 = arith.constant 0 : i32
    %c0_i32_0 = arith.constant 0 : i32
    %c0_i32_1 = arith.constant 0 : i32
    return %arg0, %c0_i32, %arg1, %c0_i32_0 : i32, i32, i32, i32
  }
}

</mosaic_0001>

<llo_original>
// kernel: _forward_impl.1
$region0: #{_forward_impl.1}
  #allocation0 [shape = 'u32[]', space=smem, size = 0x4, offset = 0x4, fixed_abs, tag = 'smem constant byte address 0x4 - core index']
  #allocation1 [shape = 'u32[144,128]{1,0:T(1,128)}', space=vmem, size = 0x12000, scoped, tag = 'internal scratch']
  %s0 = inlined_call_operand.vmem [shape: f32[2], index: 0, kind: input, shape index: {}]
  %s1 = inlined_call_operand.vmem [shape: f32[2], index: 1, kind: input, shape index: {}]
  %s2 = inlined_call_operand.vmem [shape: f32[2,1,16,16], index: 2, kind: input, shape index: {}]
  %s3 = inlined_call_operand.vmem [shape: f32[2,4,16,16], index: 3, kind: input, shape index: {}]
  %s4 = inlined_call_operand.hbm [shape: f32[2,4,16,16], index: 4, kind: output, shape index: {}]
  %s5 = sld [smem:[#allocation0]]
  $region95: #{_forward_impl.1} parent=0
    _
  %s7 = ssub.s32 1, %s5
  %s8 = scalar_select 0, %s7, %s5
  $region1: #{_forward_impl.1} parent=0
    #allocation2 [shape = 'u8[512]{0}', space=smem, size = 0x200, scoped, tag = 'input window, operand 0, single buffered']
    #allocation3 [shape = 's32[2]{0}', space=sflag, size = 0x8, scoped, tag = 'scoped memory for _forward_impl.1']
    #allocation4 [shape = 's32[2]{0}', space=sflag, size = 0x8, scoped, tag = 'scoped memory for _forward_impl.1']
    #allocation5 [shape = 'u8[512]{0}', space=smem, size = 0x200, scoped, tag = 'input window, operand 1, single buffered']
    #allocation6 [shape = 's32[1]{0}', space=sflag, size = 0x4, scoped, tag = 'scoped memory for _forward_impl.1']
    #allocation7 [shape = 'u8[32768]{0}', space=vmem, size = 0x8000, scoped, tag = 'input window, operand 3']
    #allocation8 [shape = 'u8[32768]{0}', space=vmem, size = 0x8000, scoped, tag = 'output window, operand 0']
    %9 = vsyncpa [#allocation4], 0
    %10 = vsyncpa [#allocation6], 0
    %11 = vsyncpa [#allocation3], 0
    %s12 = scalar_lea.sflag [#allocation3], 1
    %13 = vsyncpa %s12, 0
    loop: start=0, step=1, limit=6
    $region2: #{_forward_impl.1} parent=1 // loop_pre_header
      _
    $region3: #{_forward_impl.1} parent=1 // loop_header
      %s15 = sphi 0, %s19
      %p16 = scmp.ge.s32.totalorder %s15, 6
      %s22 = sphi 0, %s34
      %s23 = sphi 0, %s30
      %s24 = sphi 0, %s22
      %s25 = sphi 0, %s23
      %s26 = sphi 0, %s24
      %s27 = sphi 0, %s25
      %s35 = sphi 0, %s35
      %s37 = sphi 0, %s35
      %s38 = sphi 0, %s37
      %s52 = sphi 0, %s38
      %s56 = sphi 0, %s56
      %s58 = sphi 0, %s56
      %s59 = sphi 0, %s58
      %s73 = sphi 0, %s59
      %s81 = sphi 0, %s83
      %s84 = sphi 0, %s81
      %s85 = sphi 0, %s84
      %s101 = sphi 0, %s85
      %s109 = sphi 0, %s111
      %s112 = sphi 0, %s109
      %s113 = sphi 0, %s112
      %s129 = sphi 0, %s113
      %s137 = sphi 0, %s139
      %s140 = sphi 0, %s137
      %s141 = sphi 0, %s140
      %s157 = sphi 0, %s141
    $region4: #{_forward_impl.1} parent=1 // loop_header_branch
      %18 = sbr.rel (%p16) target = $region8
    $region5: #{_forward_impl.1} parent=1 // loop_body
      %s20 = ssub.s32 %s15, 1
      %s21 = ssub.s32 %s15, 2
      %s28 = sadd.s32 1, %s23
      %p29 = scmp.ge.s32.totalorder %s28, 2
      %s30 = scalar_select %p29, 0, %s28
      %s31 = sadd.s32 1, %s22
      %s32 = scalar_select %p29, %s31, %s22
      %p33 = scmp.ge.s32.totalorder %s32, 2
      %s34 = scalar_select %p33, 0, %s32
      %s36 = sadd.s32 %s35, 1
      %p39 = scmp.eq.s32.totalorder %s15, 3
      %p40 = scmp.ne.s32.totalorder %s35, %s37
      %p41 = scmp.eq.s32.totalorder %s15, 0
      %p42 = por %p40, %p41
      %p43 = scmp.ne.s32.totalorder %s35, %s37
      %p44 = scmp.eq.s32.totalorder %s20, 3
      %p45 = por %p43, %p44
      %p46 = scmp.ne.s32.totalorder %s37, %s38
      %p47 = scmp.eq.s32.totalorder %s20, 0
      %p48 = por %p46, %p47
      %p49 = scmp.ne.s32.totalorder %s37, %s38
      %p50 = scmp.eq.s32.totalorder %s21, 3
      %p51 = por %p49, %p50
      %p53 = scmp.ne.s32.totalorder %s38, %s52
      %p54 = scmp.eq.s32.totalorder %s21, 0
      %p55 = por %p53, %p54
      %s57 = sadd.s32 %s56, 1
      %p60 = scmp.eq.s32.totalorder %s15, 3
      %p61 = scmp.ne.s32.totalorder %s56, %s58
      %p62 = scmp.eq.s32.totalorder %s15, 0
      %p63 = por %p61, %p62
      %p64 = scmp.ne.s32.totalorder %s56, %s58
      %p65 = scmp.eq.s32.totalorder %s20, 3
      %p66 = por %p64, %p65
      %p67 = scmp.ne.s32.totalorder %s58, %s59
      %p68 = scmp.eq.s32.totalorder %s20, 0
      %p69 = por %p67, %p68
      %p70 = scmp.ne.s32.totalorder %s58, %s59
      %p71 = scmp.eq.s32.totalorder %s21, 3
      %p72 = por %p70, %p71
      %p74 = scmp.ne.s32.totalorder %s59, %s73
      %p75 = scmp.eq.s32.totalorder %s21, 0
      %p76 = por %p74, %p75
      %s77 = ssub.s32 %s22, %s34
      %s78 = ssub.s32 %s23, %s30
      %s79 = sor.u32 %s77, %s78
      %p80 = scmp.eq.s32.totalorder %s79, 0
      %s82 = sadd.s32 %s81, 1
      %s83 = scalar_select %p80, %s81, %s82
      %p86 = pneg %p80
      %p87 = scmp.eq.s32.totalorder %s15, 3
      %p88 = por %p86, %p87
      %p89 = scmp.ne.s32.totalorder %s81, %s84
      %p90 = scmp.eq.s32.totalorder %s15, 0
      %p91 = por %p89, %p90
      %p92 = scmp.ne.s32.totalorder %s81, %s84
      %p93 = scmp.eq.s32.totalorder %s20, 3
      %p94 = por %p92, %p93
      %p95 = scmp.ne.s32.totalorder %s84, %s85
      %p96 = scmp.eq.s32.totalorder %s20, 0
      %p97 = por %p95, %p96
      %p98 = scmp.ne.s32.totalorder %s84, %s85
      %p99 = scmp.eq.s32.totalorder %s21, 3
      %p100 = por %p98, %p99
      %p102 = scmp.ne.s32.totalorder %s85, %s101
      %p103 = scmp.eq.s32.totalorder %s21, 0
      %p104 = por %p102, %p103
      %s105 = ssub.s32 %s22, %s34
      %s106 = ssub.s32 %s23, %s30
      %s107 = sor.u32 %s105, %s106
      %p108 = scmp.eq.s32.totalorder %s107, 0
      %s110 = sadd.s32 %s109, 1
      %s111 = scalar_select %p108, %s109, %s110
      %p114 = pneg %p108
      %p115 = scmp.eq.s32.totalorder %s15, 3
      %p116 = por %p114, %p115
      %p117 = scmp.ne.s32.totalorder %s109, %s112
      %p118 = scmp.eq.s32.totalorder %s15, 0
      %p119 = por %p117, %p118
      %p120 = scmp.ne.s32.totalorder %s109, %s112
      %p121 = scmp.eq.s32.totalorder %s20, 3
      %p122 = por %p120, %p121
      %p123 = scmp.ne.s32.totalorder %s112, %s113
      %p124 = scmp.eq.s32.totalorder %s20, 0
      %p125 = por %p123, %p124
      %p126 = scmp.ne.s32.totalorder %s112, %s113
      %p127 = scmp.eq.s32.totalorder %s21, 3
      %p128 = por %p126, %p127
      %p130 = scmp.ne.s32.totalorder %s113, %s129
      %p131 = scmp.eq.s32.totalorder %s21, 0
      %p132 = por %p130, %p131
      %s133 = ssub.s32 %s22, %s34
      %s134 = ssub.s32 %s23, %s30
      %s135 = sor.u32 %s133, %s134
      %p136 = scmp.eq.s32.totalorder %s135, 0
      %s138 = sadd.s32 %s137, 1
      %s139 = scalar_select %p136, %s137, %s138
      %p142 = pneg %p136
      %p143 = scmp.eq.s32.totalorder %s15, 3
      %p144 = por %p142, %p143
      %p145 = scmp.ne.s32.totalorder %s137, %s140
      %p146 = scmp.eq.s32.totalorder %s15, 0
      %p147 = por %p145, %p146
      %p148 = scmp.ne.s32.totalorder %s137, %s140
      %p149 = scmp.eq.s32.totalorder %s20, 3
      %p150 = por %p148, %p149
      %p151 = scmp.ne.s32.totalorder %s140, %s141
      %p152 = scmp.eq.s32.totalorder %s20, 0
      %p153 = por %p151, %p152
      %p154 = scmp.ne.s32.totalorder %s140, %s141
      %p155 = scmp.eq.s32.totalorder %s21, 3
      %p156 = por %p154, %p155
      %p158 = scmp.ne.s32.totalorder %s141, %s157
      %p159 = scmp.eq.s32.totalorder %s21, 0
      %p160 = por %p158, %p159
      %p161 = scmp.le.s32.totalorder 1, %s15
      %p162 = scmp.lt.s32.totalorder %s15, 5
      %p163 = pnand %p161, %p162
      %p164 = pneg %p163
      // Predicated region
      $region9: #{_forward_impl.1} parent=5 // pred_check
        _
      $region10: #{_forward_impl.1} parent=5 // pred_check_branch
        %166 = sbr.rel (%p163) target = $region12
      $region11: #{_forward_impl.1} parent=5 // pred_region
        %s167 = ssub.s32 %s15, 1
        // Predicated region
        $region13: #{_forward_impl.1} parent=11 // pred_check
          %p168 = pneg %p48
        $region14: #{_forward_impl.1} parent=11 // pred_check_branch
          %170 = sbr.rel (%p168) target = $region16
        $region15: #{_forward_impl.1} parent=11 // pred_region
          %s172 = ssub.s32 16, 16
          %173 = vsyncadd [#allocation4], %s172
          %s175 = sshll.u32 %s0, 4
          %s176 = int_to_ptr.vmem [resolvable:$true] %s175
          %178 = dma.vmem_to_smem %s176, 16, [#allocation2], [#allocation4]
        $region16: #{_forward_impl.1} parent=11 // pred_fallthru
          _
        // Predicated region
        $region17: #{_forward_impl.1} parent=11 // pred_check
          %p179 = pneg %p69
        $region18: #{_forward_impl.1} parent=11 // pred_check_branch
          %181 = sbr.rel (%p179) target = $region20
        $region19: #{_forward_impl.1} parent=11 // pred_region
          %s183 = ssub.s32 16, 16
          %184 = vsyncadd [#allocation6], %s183
          %s186 = sshll.u32 %s1, 4
          %s187 = int_to_ptr.vmem [resolvable:$true] %s186
          %189 = dma.vmem_to_smem %s187, 16, [#allocation5], [#allocation6]
        $region20: #{_forward_impl.1} parent=11 // pred_fallthru
          _
      $region12: #{_forward_impl.1} parent=5 // pred_fallthru
        _
      %p190 = scmp.lt.s32.totalorder %s15, 4
      // Predicated region
      $region21: #{_forward_impl.1} parent=5 // pred_check
        %p191 = pneg %p190
      $region22: #{_forward_impl.1} parent=5 // pred_check_branch
        %193 = sbr.rel (%p191) target = $region24
      $region23: #{_forward_impl.1} parent=5 // pred_region
        // Predicated region
        $region25: #{_forward_impl.1} parent=23 // pred_check
          %p194 = pneg %p91
        $region26: #{_forward_impl.1} parent=23 // pred_check_branch
          %196 = sbr.rel (%p194) target = $region28
        $region27: #{_forward_impl.1} parent=23 // pred_region
          %p197 = scmp.lt.s32.totalorder %s22, 1
          %s198 = scalar_select %p197, %s22, 1
          %p199 = scmp.lt.s32.totalorder %s23, 1
          %s200 = scalar_select %p199, %s23, 1
          %s201 = smul.addr %s198, 2
          %s202 = sadd.s32 %s200, %s201
          %s203 = smul.addr %s202, 8
          %s204 = scalar_lea.vmem %s2, %s203
        $region28: #{_forward_impl.1} parent=23 // pred_fallthru
          _
        // Predicated region
        $region29: #{_forward_impl.1} parent=23 // pred_check
          %p205 = pneg %p119
        $region30: #{_forward_impl.1} parent=23 // pred_check_branch
          %207 = sbr.rel (%p205) target = $region32
        $region31: #{_forward_impl.1} parent=23 // pred_region
          %s208 = sand.u32 %s109, 1
          %s209 = sand.u32 %s109, 1
          %s210 = smul.addr %s209, 32
          %s211 = scalar_lea.vmem [#allocation7], %s210
          %s212 = smul.addr %s22, 8
          %s213 = sadd.s32 %s23, %s212
          %s214 = smul.addr %s213, 8
          %s215 = scalar_lea.vmem %s3, %s214
          // Predicated region
          $region33: #{_forward_impl.1} parent=31 // pred_check
            _
          $region34: #{_forward_impl.1} parent=31 // pred_check_branch
            %217 = sbr.rel (0) target = $region36
          $region35: #{_forward_impl.1} parent=31 // pred_region
            // Predicated region
            $region37: #{_forward_impl.1} parent=35 // pred_check
              _
            $region38: #{_forward_impl.1} parent=35 // pred_check_branch
              %219 = sbr.rel (0) target = $region40
            $region39: #{_forward_impl.1} parent=35 // pred_region
              // Predicated region
              $region52: #{_forward_impl.1} parent=39 // pred_check
                _
              $region53: #{_forward_impl.1} parent=39 // pred_check_branch
                %241 = sbr.rel (0) target = $region55
              $region54: #{_forward_impl.1} parent=39 // pred_region
                loop: start=0, step=1, limit=1
                $region56: #{_forward_impl.1} parent=54 // loop_pre_header
                  _
                $region57: #{_forward_impl.1} parent=54 // loop_header
                  %s243 = sphi 0, %s247
                  %p244 = scmp.ge.s32.totalorder %s243, 1
                  %s248 = sphi %s215, %s215
                  %s249 = sphi %s211, %s211
                $region58: #{_forward_impl.1} parent=54 // loop_header_branch
                  %246 = sbr.rel (%p244) target = $region62
                $region59: #{_forward_impl.1} parent=54 // loop_body
                  %v250 = vld [vmem:[%s248] sm:$0xff]
                  %251 = vst [vmem:[%s249] sm:$0xff] %v250
                  %v252 = vld [vmem:[%s248 + $0x10] sm:$0xff]
                  %253 = vst [vmem:[%s249 + $0x8] sm:$0xff] %v252
                  %v254 = vld [vmem:[%s248 + $0x20] sm:$0xff]
                  %255 = vst [vmem:[%s249 + $0x10] sm:$0xff] %v254
                  %v256 = vld [vmem:[%s248 + $0x30] sm:$0xff]
                  %257 = vst [vmem:[%s249 + $0x18] sm:$0xff] %v256
                $region60: #{_forward_impl.1} parent=54 // loop_footer
                  %s247 = sadd.s32 1, %s243
                $region61: #{_forward_impl.1} parent=54 // loop_footer_branch
                  %242 = sbr.rel target = $region57
                $region62: #{_forward_impl.1} parent=54 // loop_exit
                  _
              $region55: #{_forward_impl.1} parent=39 // pred_fallthru
                _
              // Predicated region
              $region63: #{_forward_impl.1} parent=39 // pred_check
                _
              $region64: #{_forward_impl.1} parent=39 // pred_check_branch
                %259 = sbr.rel target = $region66
              $region65: #{_forward_impl.1} parent=39 // pred_region
                _
              $region66: #{_forward_impl.1} parent=39 // pred_fallthru
                _
            $region40: #{_forward_impl.1} parent=35 // pred_fallthru
              _
            // Predicated region
            $region41: #{_forward_impl.1} parent=35 // pred_check
              _
            $region42: #{_forward_impl.1} parent=35 // pred_check_branch
              %221 = sbr.rel target = $region44
            $region43: #{_forward_impl.1} parent=35 // pred_region
              %s223 = ssub.s32 256, 1
              loop: start=0, step=1, limit=1
              $region45: #{_forward_impl.1} parent=43 // loop_pre_header
                _
              $region46: #{_forward_impl.1} parent=43 // loop_header
                %s225 = sphi 0, %s229
                %p226 = scmp.ge.s32.totalorder %s225, 1
                %s230 = sphi %s215, %s215
                %s231 = sphi %s211, %s211
              $region47: #{_forward_impl.1} parent=43 // loop_header_branch
                %228 = sbr.rel (%p226) target = $region51
              $region48: #{_forward_impl.1} parent=43 // loop_body
                %v232 = vld [vmem:[%s230] sm:%s223]
                %233 = vst [vmem:[%s231] sm:%s223] %v232
                %v234 = vld [vmem:[%s230 + $0x10] sm:%s223]
                %235 = vst [vmem:[%s231 + $0x8] sm:%s223] %v234
                %v236 = vld [vmem:[%s230 + $0x20] sm:%s223]
                %237 = vst [vmem:[%s231 + $0x10] sm:%s223] %v236
                %v238 = vld [vmem:[%s230 + $0x30] sm:%s223]
                %239 = vst [vmem:[%s231 + $0x18] sm:%s223] %v238
              $region49: #{_forward_impl.1} parent=43 // loop_footer
                %s229 = sadd.s32 1, %s225
              $region50: #{_forward_impl.1} parent=43 // loop_footer_branch
                %224 = sbr.rel target = $region46
              $region51: #{_forward_impl.1} parent=43 // loop_exit
                _
            $region44: #{_forward_impl.1} parent=35 // pred_fallthru
              _
          $region36: #{_forward_impl.1} parent=31 // pred_fallthru
            _
          %260 = vnop
        $region32: #{_forward_impl.1} parent=23 // pred_fallthru
          _
      $region24: #{_forward_impl.1} parent=5 // pred_fallthru
        _
      %p261 = scmp.le.s32.totalorder 1, %s15
      %p262 = scmp.lt.s32.totalorder %s15, 5
      %p263 = pnand %p261, %p262
      %p264 = pneg %p263
      // Predicated region
      $region67: #{_forward_impl.1} parent=5 // pred_check
        _
      $region68: #{_forward_impl.1} parent=5 // pred_check_branch
        %266 = sbr.rel (%p263) target = $region70
      $region69: #{_forward_impl.1} parent=5 // pred_region
        %s267 = ssub.s32 %s15, 1
        // Predicated region
        $region71: #{_forward_impl.1} parent=69 // pred_check
          %p268 = pneg %p48
        $region72: #{_forward_impl.1} parent=69 // pred_check_branch
          %270 = sbr.rel (%p268) target = $region74
        $region73: #{_forward_impl.1} parent=69 // pred_region
          %271 = dma.done [#allocation4], 16
        $region74: #{_forward_impl.1} parent=69 // pred_fallthru
          _
        // Predicated region
        $region75: #{_forward_impl.1} parent=69 // pred_check
          %p272 = pneg %p69
        $region76: #{_forward_impl.1} parent=69 // pred_check_branch
          %274 = sbr.rel (%p272) target = $region78
        $region77: #{_forward_impl.1} parent=69 // pred_region
          %275 = dma.done [#allocation6], 16
        $region78: #{_forward_impl.1} parent=69 // pred_fallthru
          _
        %s276 = sand.u32 %s112, 1
        %s277 = sand.u32 %s112, 1
        %s278 = smul.addr %s277, 32
        %s279 = scalar_lea.vmem [#allocation7], %s278
        // Predicated region
        $region79: #{_forward_impl.1} parent=69 // pred_check
          %p280 = pneg %p125
        $region80: #{_forward_impl.1} parent=69 // pred_check_branch
          %282 = sbr.rel (%p280) target = $region82
        $region81: #{_forward_impl.1} parent=69 // pred_region
          _
        $region82: #{_forward_impl.1} parent=69 // pred_fallthru
          _
        %283 = sfence
        %p284 = pneg %p48
        %p285 = pneg %p45
        %p286 = pneg %p69
        %p287 = pneg %p66
        %p288 = scmp.lt.s32.totalorder %s24, 1
        %s289 = scalar_select %p288, %s24, 1
        %p290 = scmp.lt.s32.totalorder %s25, 1
        %s291 = scalar_select %p290, %s25, 1
        %s292 = smul.addr %s289, 2
        %s293 = sadd.s32 %s291, %s292
        %s294 = smul.addr %s293, 8
        %s295 = scalar_lea.vmem %s2, %s294
        %p296 = pneg %p97
        %p297 = pneg %p94
        %s298 = sand.u32 %s112, 1
        %s299 = sand.u32 %s112, 1
        %s300 = smul.addr %s299, 32
        %s301 = scalar_lea.vmem [#allocation7], %s300
        %p302 = pneg %p125
        %p303 = pneg %p122
        %p304 = pneg %p153
        %p305 = pneg %p150
        %s306 = sand.u32 %s140, 1
        %s307 = scalar_lea.sflag [#allocation3], %s306
        %s308 = sand.u32 %s140, 1
        %s309 = smul.addr %s308, 32
        %s310 = scalar_lea.vmem [#allocation8], %s309
        %p311 = scmp.lt.s32.totalorder %s24, 1
        %s312 = scalar_select %p311, %s24, 1
        %p313 = scmp.lt.s32.totalorder %s25, 1
        %s314 = scalar_select %p313, %s25, 1
        %s315 = smul.addr %s312, 2
        %s316 = sadd.s32 %s314, %s315
        %s317 = smul.addr %s316, 8
        %s318 = scalar_lea.vmem %s2, %s317
        %s319 = sld [smem:[#allocation2 + %s24]]
        %s320 = sld [smem:[#allocation5 + %s24]]
        %v321 = vld [vmem:[%s318] sm:$0xff]
        %v322 = vmul.f32 %v321, 1.442695
        %v323 = vpow.pop %v322
        %v324 = vstv %s319
        %v325 = vsub.f32 %v323, %v324
        %v326 = vadd.f32 %v325, 1e-20
        %v327 = vstv %s320
        %v328 = vmul.f32 %v326, %v327
        %v329 = vadd.f32 %v328, 0.7
        %v330 = vld [vmem:[%s279] sm:$0xff]
        %v331 = vld [vmem:[%s279 + $0x8] sm:$0xff]
        %v332 = vld [vmem:[%s279 + $0x10] sm:$0xff]
        %v333 = vld [vmem:[%s279 + $0x18] sm:$0xff]
        %v334 = vmul.f32 %v330, %v329
        %v335 = vmul.f32 %v331, %v329
        %v336 = vmul.f32 %v332, %v329
        %v337 = vmul.f32 %v333, %v329
        %vm338 = vcmask 130048
        %339 = vst.msk [vmem:[%s310] sm:$0xff] %vm338, %v334
        %340 = vst.msk [vmem:[%s310 + $0x8] sm:$0xff] %vm338, %v335
        %341 = vst.msk [vmem:[%s310 + $0x10] sm:$0xff] %vm338, %v336
        %342 = vst.msk [vmem:[%s310 + $0x18] sm:$0xff] %vm338, %v337
        %s343 = sand.u32 %s140, 1
        %s344 = scalar_lea.sflag [#allocation3], %s343
        %s345 = sand.u32 %s140, 1
        %s346 = smul.addr %s345, 32
        %s347 = scalar_lea.vmem [#allocation8], %s346
        // Predicated region
        $region83: #{_forward_impl.1} parent=69 // pred_check
          %p348 = pneg %p150
        $region84: #{_forward_impl.1} parent=69 // pred_check_branch
          %350 = sbr.rel (%p348) target = $region86
        $region85: #{_forward_impl.1} parent=69 // pred_region
          %s352 = ssub.s32 512, 512
          %353 = vsyncadd %s344, %s352
          %s354 = smul.addr %s24, 8
          %s355 = sadd.s32 %s25, %s354
          %s356 = smul.addr %s355, 128
          %s357 = scalar_lea.hbm %s4, %s356
          %s358 = sshll.u32 %s347, 4
          %s359 = int_to_ptr.vmem [resolvable:$true] %s358
          %364 = dma.vmem_to_hbm [thread:$0]  %s359, 512, %s357, %s344, 128, 256, 8
        $region86: #{_forward_impl.1} parent=69 // pred_fallthru
          _
      $region70: #{_forward_impl.1} parent=5 // pred_fallthru
        _
      %p365 = scmp.le.s32.totalorder 2, %s15
      // Predicated region
      $region87: #{_forward_impl.1} parent=5 // pred_check
        %p366 = pneg %p365
      $region88: #{_forward_impl.1} parent=5 // pred_check_branch
        %368 = sbr.rel (%p366) target = $region90
      $region89: #{_forward_impl.1} parent=5 // pred_region
        %s369 = ssub.s32 %s15, 2
        // Predicated region
        $region91: #{_forward_impl.1} parent=89 // pred_check
          %p370 = pneg %p156
        $region92: #{_forward_impl.1} parent=89 // pred_check_branch
          %372 = sbr.rel (%p370) target = $region94
        $region93: #{_forward_impl.1} parent=89 // pred_region
          %s373 = sand.u32 %s141, 1
          %s374 = scalar_lea.sflag [#allocation3], %s373
          %s375 = sand.u32 %s141, 1
          %s376 = smul.addr %s375, 32
          %s377 = scalar_lea.vmem [#allocation8], %s376
          %378 = dma.done %s374, 512
        $region94: #{_forward_impl.1} parent=89 // pred_fallthru
          _
      $region90: #{_forward_impl.1} parent=5 // pred_fallthru
        _
    $region6: #{_forward_impl.1} parent=1 // loop_footer
      %s19 = sadd.s32 1, %s15
    $region7: #{_forward_impl.1} parent=1 // loop_footer_branch
      %14 = sbr.rel target = $region3
    $region8: #{_forward_impl.1} parent=1 // loop_exit
      _
    %379 = vsyncpa [#allocation3], 1
    %s380 = scalar_lea.sflag [#allocation3], 1
    %381 = vsyncpa %s380, 1
    %382 = vsyncpa [#allocation4], 1
    %s383 = scalar_lea.sflag [#allocation4], 1
    %384 = vsyncpa %s383, 1
    %385 = vsyncpa [#allocation6], 1

</llo_original>
